<compile_context>
chip_gen: v7x
topology: tpu7x:2x2x1
jax: 0.10.0
libtpu: 0.0.40
codegen_flags: <defaults>
</compile_context>

<pallas_src>
import numpy as np
import jax
import jax.numpy as jnp
from jax import lax
from jax.experimental import pallas as pl
from jax.experimental.pallas import tpu as pltpu

LN_EPS = 1e-5


# --------------------------------------------------------------------------- #
# Kernel
# --------------------------------------------------------------------------- #
def _make_kernel(n_tokens, n_imgs_pad, gelu_approximate):
    """n_tokens = tokens per image (N); n_imgs_pad = per-step image count padded
    to >= 8 so the tiny one-hot matmuls stay sublane-tile aligned (extra rows
    are all-zero and contribute nothing)."""
    inv_n = 1.0 / n_tokens

    def kernel(x_ref, gamma_ref, beta_ref, w1l_ref, w1g_ref, b1_ref, w2d_ref,
               out_ref):
        M, C = x_ref.shape                                    # M = bblk * N
        mm_dtype = w1l_ref.dtype                              # bf16 MXU inputs

        # ---- LayerNorm over channels (f32 statistics) ----
        x = x_ref[...].astype(jnp.float32)                    # [M, C]
        mu = jnp.mean(x, axis=-1, keepdims=True)
        xc = x - mu
        var = jnp.mean(xc * xc, axis=-1, keepdims=True)
        xn = xc * lax.rsqrt(var + LN_EPS)
        xn = xn * gamma_ref[...] + beta_ref[...]              # [M, C]
        xn_b = xn.astype(mm_dtype)

        # ---- local half, tokens-on-lanes: hT [inner, M] = W1_loc^T (NT) xn ----
        hT = lax.dot_general(w1l_ref[...], xn_b, (((1,), (1,)), ((), ())),
                             preferred_element_type=jnp.float32)   # [inner, M]

        # ---- global half (keep-policy == all-ones, as in the module) ----
        # per-image token mean + broadcast back to tokens via one-hot matmuls
        # on the otherwise-idle MXU (no cross-sublane reduces / relayouts).
        row = lax.broadcasted_iota(jnp.int32, (n_imgs_pad, M), 0)
        col = lax.broadcasted_iota(jnp.int32, (n_imgs_pad, M), 1)
        member = (col >= row * n_tokens) & (col < (row + 1) * n_tokens)
        oh_mean = jnp.where(member, inv_n, 0.0).astype(mm_dtype)   # [BP, M]
        s = jnp.dot(oh_mean, xn_b,
                    preferred_element_type=jnp.float32)            # [BP, C]

        hg = lax.dot_general(w1g_ref[...], s.astype(mm_dtype),
                             (((1,), (1,)), ((), ())),
                             preferred_element_type=jnp.float32)   # [inner, BP]
        hg = hg + b1_ref[...]                                      # + b1 [inner,1]

        oh_one = jnp.where(member, 1.0, 0.0).astype(mm_dtype)      # [BP, M]
        hT = hT + jnp.dot(hg.astype(mm_dtype), oh_one,
                          preferred_element_type=jnp.float32)      # [inner, M]

        # ---- GELU + class-logit difference, all full-width on lanes ----
        hT = jax.nn.gelu(hT, approximate=gelu_approximate)
        d = jnp.sum(hT * w2d_ref[...], axis=0, keepdims=True)      # [1, M]
        out_ref[0] = d.astype(out_ref.dtype)

    return kernel


# --------------------------------------------------------------------------- #
# Tiling policy (generation-aware)
# --------------------------------------------------------------------------- #
def _vmem_capacity_bytes():
    try:
        info = pltpu.get_tpu_info()
        cap = getattr(info, "vmem_capacity_bytes", None)
        if cap:
            return int(cap)
    except Exception:
        pass
    return 64 << 20      # conservative fallback (v7x per-core VMEM)


def _pick_bblk(B, N, C, x_itemsize, inner, vmem_budget, target_rows=1024):
    """Images per grid step.  Single big blocks are preferred (no forced
    multi-step split on single-TC v5e/v6e); rows capped at ~1024 and by a
    conservative VMEM estimate.  On v7x keep nblk balanced across the 2 TCs
    (dimension_semantics=('parallel',) shards the grid)."""
    def vmem_need(b):
        m = b * N
        return (2 * m * C * x_itemsize          # double-buffered x block
                + 2 * m * C * 4 + m * C * 2     # f32 LN intermediates + bf16 copy
                + 4 * C * inner * 2             # W1 halves (double-buffered)
                + (1 << 20))                    # small operands / output / slack

    divs = [d for d in range(1, B + 1) if B % d == 0]
    feasible = [d for d in divs if vmem_need(d) <= vmem_budget] or [1]
    under = [d for d in feasible if d * N <= target_rows] or [min(feasible)]
    dense = [d for d in under if (d * N) % 128 == 0]   # lane-dense output block
    return max(dense) if dense else max(under)


# --------------------------------------------------------------------------- #
# Wrapper: pred_score = LogSoftmax(MLP(concat(local, global)))  via the kernel
# --------------------------------------------------------------------------- #
def lavit_pred_score(x, gamma, beta, w1, b1, w2, b2, *, bblk=None,
                     gelu_approximate=True):
    """pred_score [B, N, 2] (log-probs).  The kernel emits only the lane-dense
    logit difference d = logit1 - logit0; the 2-class LogSoftmax is rebuilt in
    the wrapper as (-softplus(d), -softplus(-d))."""
    B, N, C = x.shape
    Ch = C // 2
    inner = w1.shape[1]

    vmem_cap = _vmem_capacity_bytes()
    if bblk is None or B % bblk != 0:
        bblk = _pick_bblk(B, N, C, x.dtype.itemsize, inner,
                          vmem_budget=int(0.7 * vmem_cap))
    if (bblk * N) % 8 != 0:
        bblk = B                       # full-array block sidesteps the 8-row rule
    nblk = B // bblk
    M = bblk * N
    BP = max(8, bblk)

    # Token-major 2-D view (free reshape); the kernel never slices lanes.
    x2d = x.reshape(B * N, C)

    # W1 pre-transposed and split into zero-padded local / global halves;
    # padding (vs. slicing xn at lane C/2) only adds hidden MXU MACs on an
    # HBM-bound kernel and keeps every operand tile-aligned.
    ch_mask = (jnp.arange(C) < Ch)[None, :]
    w1t = w1.astype(jnp.float32).T                              # [inner, C]
    w1t_loc = jnp.where(ch_mask, w1t, 0.0).astype(jnp.bfloat16)
    w1t_glb = jnp.where(ch_mask, 0.0, w1t).astype(jnp.bfloat16)
    b1_col = b1.reshape(inner, 1).astype(jnp.float32)
    w2d_col = (w2[:, 1] - w2[:, 0]).reshape(inner, 1).astype(jnp.float32)
    b2_diff = (b2.reshape(-1)[1] - b2.reshape(-1)[0]).astype(jnp.float32)

    kernel = _make_kernel(N, BP, gelu_approximate)

    cost = pl.CostEstimate(
        flops=int(2 * B * N * C * (inner + BP) + 10 * B * N * C),
        transcendentals=int(B * N * (inner + 1)),
        bytes_accessed=int(x2d.size * x2d.dtype.itemsize + B * N * 4
                           + 2 * C * inner * 2 + (2 * C + 2 * inner) * 4),
    )
    vmem_limit = int(min(0.9 * vmem_cap,
                         max(32 << 20,
                             3 * (2 * M * C * x.dtype.itemsize + 2 * M * C * 4))))

    d = pl.pallas_call(
        kernel,
        out_shape=jax.ShapeDtypeStruct((nblk, 1, M), jnp.float32),
        grid_spec=pltpu.PrefetchScalarGridSpec(
            num_scalar_prefetch=0,
            grid=(nblk,),
            in_specs=[
                pl.BlockSpec((M, C), lambda b: (b, 0)),        # x (token-major)
                pl.BlockSpec((1, C), lambda b: (0, 0)),        # LN gamma
                pl.BlockSpec((1, C), lambda b: (0, 0)),        # LN beta
                pl.BlockSpec((inner, C), lambda b: (0, 0)),    # W1^T local half
                pl.BlockSpec((inner, C), lambda b: (0, 0)),    # W1^T global half
                pl.BlockSpec((inner, 1), lambda b: (0, 0)),    # b1 column
                pl.BlockSpec((inner, 1), lambda b: (0, 0)),    # w2[:,1]-w2[:,0]
            ],
            out_specs=pl.BlockSpec((1, 1, M), lambda b: (b, 0, 0)),  # lane-dense d
        ),
        compiler_params=pltpu.CompilerParams(
            dimension_semantics=("parallel",),
            vmem_limit_bytes=vmem_limit),
        cost_estimate=cost,
    )(x2d, gamma, beta, w1t_loc, w1t_glb, b1_col, w2d_col)

    d = d.reshape(B, N) + b2_diff
    # 2-class log-softmax from the logit difference:
    #   logprob0 = -softplus(d), logprob1 = -softplus(-d)
    return jnp.stack([-jax.nn.softplus(d), -jax.nn.softplus(-d)], axis=-1)


# Pure-JAX reference of the module's forward_features + out_conv (for testing).
def lavit_pred_score_ref(x, gamma, beta, w1, b1, w2, b2):
    xf = x.astype(jnp.float32)
    mu = xf.mean(-1, keepdims=True)
    var = ((xf - mu) ** 2).mean(-1, keepdims=True)
    xn = (xf - mu) * lax.rsqrt(var + LN_EPS) * gamma[0] + beta[0]
    B, N, C = x.shape
    Ch = C // 2
    glob = xn[:, :, Ch:].mean(axis=1, keepdims=True)
    feat = jnp.concatenate([xn[:, :, :Ch], jnp.broadcast_to(glob, (B, N, Ch))], -1)
    h = jax.nn.gelu(feat @ w1 + b1[0], approximate=False)
    logits = h @ w2 + b2[0]
    return jax.nn.log_softmax(logits, axis=-1)


# --------------------------------------------------------------------------- #
# Full forward (module semantics: list of variable-length kept-token arrays)
# --------------------------------------------------------------------------- #
def lavit_token_compressor(x, params, key):
    gamma, beta, w1, b1, w2, b2 = params
    B, N, C = x.shape

    pred_score = lavit_pred_score(x, gamma, beta, w1, b1, w2, b2)   # [B, N, 2]

    # Gumbel-softmax (hard=True, tau=1): keep token iff class 0 wins the argmax.
    g = jax.random.gumbel(key, pred_score.shape, dtype=pred_score.dtype)
    keep = jnp.argmax(pred_score + g, axis=-1) == 0                 # [B, N] bool

    # TODO(synk): the ragged masked_select / variable-length per-image split has
    # no static-shape Pallas equivalent; done host-side.  If downstream can
    # consume a padded layout, replace with an on-device cumsum + gather.
    keep_np = np.asarray(jax.device_get(keep))
    x_np = np.asarray(jax.device_get(x))
    return [x_np[b][keep_np[b]] for b in range(B)], pred_score


def init_params(key, embed_dim, inner_dim):
    """Deterministic synthetic init mirroring the module's _init_weights."""
    k1, k2 = jax.random.split(key)
    gamma = jnp.ones((1, embed_dim), jnp.float32)                   # LN weight = 1
    beta = jnp.zeros((1, embed_dim), jnp.float32)                   # LN bias = 0
    w1 = jax.random.normal(k1, (embed_dim, inner_dim), jnp.float32) * 0.02
    b1 = jnp.zeros((1, inner_dim), jnp.float32)
    w2 = jax.random.normal(k2, (inner_dim, 2), jnp.float32) * 0.02
    b2 = jnp.zeros((1, 2), jnp.float32)
    return gamma, beta, w1, b1, w2, b2


if __name__ == "__main__":
    B, N, C = 2, 64, 128      # small shapes consistent with [B, tokens, embed_dim]
    inner_dim = 32

    root = jax.random.PRNGKey(0)
    k_x, k_p, k_g = jax.random.split(root, 3)

    # x in its producer dtype (f32); no wrapper-side bf16 cast (extra HBM pass).
    x = jax.random.normal(k_x, (B, N, C), jnp.float32)
    params = init_params(k_p, C, inner_dim)

    remained_tokens, pred_score = lavit_token_compressor(x, params, k_g)
    jax.block_until_ready(pred_score)

    # sanity checks
    assert pred_score.shape == (B, N, 2)
    # log-softmax rows must sum to 1 in prob space (exact by construction)
    assert np.allclose(np.exp(np.asarray(pred_score)).sum(-1), 1.0, atol=1e-5)
    # compare against the pure-JAX reference (bf16 MXU + tanh-GELU tolerance)
    ref = np.asarray(lavit_pred_score_ref(x, *params))
    assert np.allclose(np.asarray(pred_score), ref, atol=2e-2), \
        float(np.max(np.abs(np.asarray(pred_score) - ref)))
    for t in remained_tokens:
        assert t.ndim == 2 and t.shape[1] == C and 0 <= t.shape[0] <= N
        assert t.dtype == np.float32        # original-precision tokens returned

    print("KERNEL_OK")
</pallas_src>

<mosaic_0001>
module attributes {stable_mosaic.version = 11 : i64} {
  func.func @kernel(%arg0: i32, %arg1: memref<128x128xf32, #tpu.memory_space<vmem>>, %arg2: memref<1x128xf32, #tpu.memory_space<vmem>>, %arg3: memref<1x128xf32, #tpu.memory_space<vmem>>, %arg4: memref<32x128xbf16, #tpu.memory_space<vmem>>, %arg5: memref<32x128xbf16, #tpu.memory_space<vmem>>, %arg6: memref<32x1xf32, #tpu.memory_space<vmem>>, %arg7: memref<32x1xf32, #tpu.memory_space<vmem>>, %arg8: memref<1x1x128xf32, #tpu.memory_space<vmem>>) attributes {dimension_semantics = [#tpu.dimension_semantics<parallel>], iteration_bounds = array<i64: 1>, scalar_prefetch = 0 : i64, scratch_operands = 0 : i64, tpu.core_type = #tpu.core_type<tc>, window_params = [{transform_indices = @transform_0, window_bounds = array<i64: 128, 128>}, {pipeline_mode = #tpu.pipeline_mode<synchronous>, transform_indices = @transform_1, window_bounds = array<i64: 1, 128>}, {pipeline_mode = #tpu.pipeline_mode<synchronous>, transform_indices = @transform_2, window_bounds = array<i64: 1, 128>}, {pipeline_mode = #tpu.pipeline_mode<synchronous>, transform_indices = @transform_3, window_bounds = array<i64: 32, 128>}, {pipeline_mode = #tpu.pipeline_mode<synchronous>, transform_indices = @transform_4, window_bounds = array<i64: 32, 128>}, {pipeline_mode = #tpu.pipeline_mode<synchronous>, transform_indices = @transform_5, window_bounds = array<i64: 32, 1>}, {pipeline_mode = #tpu.pipeline_mode<synchronous>, transform_indices = @transform_6, window_bounds = array<i64: 32, 1>}, {transform_indices = @transform_7, window_bounds = array<i64: 1, 1, 128>}]} {
    %c0 = arith.constant 0 : index
    %c0_0 = arith.constant 0 : index
    %0 = vector.load %arg1[%c0, %c0_0] : memref<128x128xf32, #tpu.memory_space<vmem>>, vector<128x128xf32>
    %cst = arith.constant dense<0.000000e+00> : vector<128xf32>
    %1 = vector.multi_reduction <add>, %0, %cst [1] : vector<128x128xf32> to vector<128xf32>
    %2 = vector.shape_cast %1 : vector<128xf32> to vector<128x1xf32>
    %cst_1 = arith.constant 1.280000e+02 : f32
    %3 = vector.broadcast %cst_1 : f32 to vector<128x1xf32>
    %4 = arith.divf %2, %3 : vector<128x1xf32>
    %5 = vector.broadcast %4 : vector<128x1xf32> to vector<128x128xf32>
    %6 = arith.subf %0, %5 : vector<128x128xf32>
    %7 = arith.mulf %6, %6 : vector<128x128xf32>
    %cst_2 = arith.constant dense<0.000000e+00> : vector<128xf32>
    %8 = vector.multi_reduction <add>, %7, %cst_2 [1] : vector<128x128xf32> to vector<128xf32>
    %9 = vector.shape_cast %8 : vector<128xf32> to vector<128x1xf32>
    %cst_3 = arith.constant 1.280000e+02 : f32
    %10 = vector.broadcast %cst_3 : f32 to vector<128x1xf32>
    %11 = arith.divf %9, %10 : vector<128x1xf32>
    %cst_4 = arith.constant 9.99999974E-6 : f32
    %12 = vector.broadcast %cst_4 : f32 to vector<128x1xf32>
    %13 = arith.addf %11, %12 : vector<128x1xf32>
    %14 = math.rsqrt %13 : vector<128x1xf32>
    %15 = vector.broadcast %14 : vector<128x1xf32> to vector<128x128xf32>
    %16 = arith.mulf %6, %15 : vector<128x128xf32>
    %c0_5 = arith.constant 0 : index
    %c0_6 = arith.constant 0 : index
    %17 = vector.load %arg2[%c0_5, %c0_6] : memref<1x128xf32, #tpu.memory_space<vmem>>, vector<1x128xf32>
    %18 = vector.broadcast %17 : vector<1x128xf32> to vector<128x128xf32>
    %19 = arith.mulf %16, %18 : vector<128x128xf32>
    %c0_7 = arith.constant 0 : index
    %c0_8 = arith.constant 0 : index
    %20 = vector.load %arg3[%c0_7, %c0_8] : memref<1x128xf32, #tpu.memory_space<vmem>>, vector<1x128xf32>
    %21 = vector.broadcast %20 : vector<1x128xf32> to vector<128x128xf32>
    %22 = arith.addf %19, %21 : vector<128x128xf32>
    %23 = arith.truncf %22 : vector<128x128xf32> to vector<128x128xbf16>
    %c0_9 = arith.constant 0 : index
    %c0_10 = arith.constant 0 : index
    %24 = vector.load %arg4[%c0_9, %c0_10] : memref<32x128xbf16, #tpu.memory_space<vmem>>, vector<32x128xbf16>
    %cst_11 = arith.constant dense<0.000000e+00> : vector<32x128xf32>
    %25 = tpu.matmul %24, %23, %cst_11 {dimension_numbers = #tpu.dot_dimension_numbers<[1], [1], [0], [0], [0, 0, 1, 0], [], []>} : vector<32x128xbf16>, vector<128x128xbf16>, vector<32x128xf32> -> vector<32x128xf32>
    %26 = tpu.iota {dimensions = array<i32: 0>} : vector<8x128xi32>
    %27 = tpu.iota {dimensions = array<i32: 1>} : vector<8x128xi32>
    %c64_i32 = arith.constant 64 : i32
    %28 = vector.broadcast %c64_i32 : i32 to vector<8x128xi32>
    %29 = arith.muli %26, %28 : vector<8x128xi32>
    %30 = arith.cmpi sge, %27, %29 : vector<8x128xi32>
    %c1_i32 = arith.constant 1 : i32
    %31 = vector.broadcast %c1_i32 : i32 to vector<8x128xi32>
    %32 = arith.addi %26, %31 : vector<8x128xi32>
    %c64_i32_12 = arith.constant 64 : i32
    %33 = vector.broadcast %c64_i32_12 : i32 to vector<8x128xi32>
    %34 = arith.muli %32, %33 : vector<8x128xi32>
    %35 = arith.cmpi slt, %27, %34 : vector<8x128xi32>
    %36 = arith.andi %30, %35 : vector<8x128xi1>
    %cst_13 = arith.constant 1.562500e-02 : f32
    %cst_14 = arith.constant 0.000000e+00 : f32
    %37 = vector.broadcast %cst_13 : f32 to vector<8x128xf32>
    %38 = vector.broadcast %cst_14 : f32 to vector<8x128xf32>
    %39 = arith.select %36, %37, %38 : vector<8x128xi1>, vector<8x128xf32>
    %40 = arith.truncf %39 : vector<8x128xf32> to vector<8x128xbf16>
    %cst_15 = arith.constant dense<0.000000e+00> : vector<8x128xf32>
    %41 = tpu.matmul %40, %23, %cst_15 {dimension_numbers = #tpu.dot_dimension_numbers<[1], [0], [0], [1], [0, 0, 1, 1], [], []>} : vector<8x128xbf16>, vector<128x128xbf16>, vector<8x128xf32> -> vector<8x128xf32>
    %c0_16 = arith.constant 0 : index
    %c0_17 = arith.constant 0 : index
    %42 = vector.load %arg5[%c0_16, %c0_17] : memref<32x128xbf16, #tpu.memory_space<vmem>>, vector<32x128xbf16>
    %43 = arith.truncf %41 : vector<8x128xf32> to vector<8x128xbf16>
    %cst_18 = arith.constant dense<0.000000e+00> : vector<32x8xf32>
    %44 = tpu.matmul %42, %43, %cst_18 {dimension_numbers = #tpu.dot_dimension_numbers<[1], [1], [0], [0], [0, 0, 1, 0], [], []>} : vector<32x128xbf16>, vector<8x128xbf16>, vector<32x8xf32> -> vector<32x8xf32>
    %c0_19 = arith.constant 0 : index
    %c0_20 = arith.constant 0 : index
    %45 = vector.load %arg6[%c0_19, %c0_20] : memref<32x1xf32, #tpu.memory_space<vmem>>, vector<32x1xf32>
    %46 = vector.broadcast %45 : vector<32x1xf32> to vector<32x8xf32>
    %47 = arith.addf %44, %46 : vector<32x8xf32>
    %cst_21 = arith.constant 1.000000e+00 : f32
    %cst_22 = arith.constant 0.000000e+00 : f32
    %48 = vector.broadcast %cst_21 : f32 to vector<8x128xf32>
    %49 = vector.broadcast %cst_22 : f32 to vector<8x128xf32>
    %50 = arith.select %36, %48, %49 : vector<8x128xi1>, vector<8x128xf32>
    %51 = arith.truncf %50 : vector<8x128xf32> to vector<8x128xbf16>
    %52 = arith.truncf %47 : vector<32x8xf32> to vector<32x8xbf16>
    %cst_23 = arith.constant dense<0.000000e+00> : vector<32x128xf32>
    %53 = tpu.matmul %52, %51, %cst_23 {dimension_numbers = #tpu.dot_dimension_numbers<[1], [0], [0], [1], [0, 0, 1, 1], [], []>} : vector<32x8xbf16>, vector<8x128xbf16>, vector<32x128xf32> -> vector<32x128xf32>
    %54 = arith.addf %25, %53 : vector<32x128xf32>
    %55 = arith.mulf %54, %54 : vector<32x128xf32>
    %56 = arith.mulf %54, %55 : vector<32x128xf32>
    %cst_24 = arith.constant 4.471500e-02 : f32
    %57 = vector.broadcast %cst_24 : f32 to vector<32x128xf32>
    %58 = arith.mulf %57, %56 : vector<32x128xf32>
    %59 = arith.addf %54, %58 : vector<32x128xf32>
    %cst_25 = arith.constant 0.797884583 : f32
    %60 = vector.broadcast %cst_25 : f32 to vector<32x128xf32>
    %61 = arith.mulf %60, %59 : vector<32x128xf32>
    %62 = math.tanh %61 : vector<32x128xf32>
    %cst_26 = arith.constant 1.000000e+00 : f32
    %63 = vector.broadcast %cst_26 : f32 to vector<32x128xf32>
    %64 = arith.addf %63, %62 : vector<32x128xf32>
    %cst_27 = arith.constant 5.000000e-01 : f32
    %65 = vector.broadcast %cst_27 : f32 to vector<32x128xf32>
    %66 = arith.mulf %65, %64 : vector<32x128xf32>
    %67 = arith.mulf %54, %66 : vector<32x128xf32>
    %c0_28 = arith.constant 0 : index
    %c0_29 = arith.constant 0 : index
    %68 = vector.load %arg7[%c0_28, %c0_29] : memref<32x1xf32, #tpu.memory_space<vmem>>, vector<32x1xf32>
    %69 = vector.broadcast %68 : vector<32x1xf32> to vector<32x128xf32>
    %70 = arith.mulf %67, %69 : vector<32x128xf32>
    %cst_30 = arith.constant dense<0.000000e+00> : vector<128xf32>
    %71 = vector.multi_reduction <add>, %70, %cst_30 [0] : vector<32x128xf32> to vector<128xf32>
    %72 = vector.shape_cast %71 : vector<128xf32> to vector<1x128xf32>
    %c0_31 = arith.constant 0 : index
    %c0_32 = arith.constant 0 : index
    %c0_33 = arith.constant 0 : index
    %73 = vector.load %arg8[%c0_31, %c0_32, %c0_33] : memref<1x1x128xf32, #tpu.memory_space<vmem>>, vector<1x1x128xf32>
    %74 = vector.shape_cast %73 : vector<1x1x128xf32> to vector<1x128xf32>
    %75 = vector.shape_cast %72 : vector<1x128xf32> to vector<1x1x128xf32>
    tpu.vector_store %arg8[%c0_31, %c0_32, %c0_33], %75 {strides = array<i32>} : memref<1x1x128xf32, #tpu.memory_space<vmem>>, vector<1x1x128xf32>,
    return
  }
  func.func @transform_0(%arg0: i32) -> (i32, i32) {
    %c0_i32 = arith.constant 0 : i32
    %c0_i32_0 = arith.constant 0 : i32
    return %arg0, %c0_i32 : i32, i32
  }
  func.func @transform_1(%arg0: i32) -> (i32, i32) {
    %c0_i32 = arith.constant 0 : i32
    %c0_i32_0 = arith.constant 0 : i32
    %c0_i32_1 = arith.constant 0 : i32
    return %c0_i32, %c0_i32_0 : i32, i32
  }
  func.func @transform_2(%arg0: i32) -> (i32, i32) {
    %c0_i32 = arith.constant 0 : i32
    %c0_i32_0 = arith.constant 0 : i32
    %c0_i32_1 = arith.constant 0 : i32
    return %c0_i32, %c0_i32_0 : i32, i32
  }
  func.func @transform_3(%arg0: i32) -> (i32, i32) {
    %c0_i32 = arith.constant 0 : i32
    %c0_i32_0 = arith.constant 0 : i32
    %c0_i32_1 = arith.constant 0 : i32
    return %c0_i32, %c0_i32_0 : i32, i32
  }
  func.func @transform_4(%arg0: i32) -> (i32, i32) {
    %c0_i32 = arith.constant 0 : i32
    %c0_i32_0 = arith.constant 0 : i32
    %c0_i32_1 = arith.constant 0 : i32
    return %c0_i32, %c0_i32_0 : i32, i32
  }
  func.func @transform_5(%arg0: i32) -> (i32, i32) {
    %c0_i32 = arith.constant 0 : i32
    %c0_i32_0 = arith.constant 0 : i32
    %c0_i32_1 = arith.constant 0 : i32
    return %c0_i32, %c0_i32_0 : i32, i32
  }
  func.func @transform_6(%arg0: i32) -> (i32, i32) {
    %c0_i32 = arith.constant 0 : i32
    %c0_i32_0 = arith.constant 0 : i32
    %c0_i32_1 = arith.constant 0 : i32
    return %c0_i32, %c0_i32_0 : i32, i32
  }
  func.func @transform_7(%arg0: i32) -> (i32, i32, i32) {
    %c0_i32 = arith.constant 0 : i32
    %c0_i32_0 = arith.constant 0 : i32
    %c0_i32_1 = arith.constant 0 : i32
    return %arg0, %c0_i32, %c0_i32_0 : i32, i32, i32
  }
}

</mosaic_0001>

<llo_original>
// kernel: tpu_custom_call.1
$region0: #{tpu_custom_call.1}
  #allocation0 [shape = 'u32[]', space=smem, size = 0x4, offset = 0x4, fixed_abs, tag = 'smem constant byte address 0x4 - core index']
  #allocation1 [shape = 'u32[144,128]{1,0:T(1,128)}', space=vmem, size = 0x12000, scoped, tag = 'internal scratch']
  %s0 = inlined_call_operand.hbm [shape: f32[128,128], index: 0, kind: input, shape index: {}]
  %s1 = inlined_call_operand.vmem [shape: f32[1,128], index: 1, kind: input, shape index: {}]
  %s2 = inlined_call_operand.vmem [shape: f32[1,128], index: 2, kind: input, shape index: {}]
  %s3 = inlined_call_operand.vmem [shape: bf16[32,128], index: 3, kind: input, shape index: {}]
  %s4 = inlined_call_operand.vmem [shape: bf16[32,128], index: 4, kind: input, shape index: {}]
  %s5 = inlined_call_operand.vmem [shape: f32[32,1], index: 5, kind: input, shape index: {}]
  %s6 = inlined_call_operand.vmem [shape: f32[32,1], index: 6, kind: input, shape index: {}]
  %s7 = inlined_call_operand.hbm [shape: f32[1,1,128], index: 7, kind: output, shape index: {}]
  %s8 = sld [smem:[#allocation0]]
  $region42: #{tpu_custom_call.1} parent=0
    _
  %s10 = ssub.s32 1, %s8
  %s11 = scalar_select 0, %s10, %s8
  $region1: #{tpu_custom_call.1} parent=0
    #allocation2 [shape = 'u8[65536]{0}', space=vmem, size = 0x10000, scoped, tag = 'input window, operand 0, single buffered']
    #allocation3 [shape = 's32[1]{0}', space=sflag, size = 0x4, scoped, tag = 'scoped memory for tpu_custom_call.1']
    #allocation4 [shape = 's32[1]{0}', space=sflag, size = 0x4, scoped, tag = 'scoped memory for tpu_custom_call.1']
    #allocation5 [shape = 'u8[512]{0}', space=vmem, size = 0x400, scoped, tag = 'output window, operand 0, single buffered']
    %12 = vsyncpa [#allocation3], 0
    %13 = vsyncpa [#allocation4], 0
    // Predicated region
    $region2: #{tpu_custom_call.1} parent=1 // pred_check
      _
    $region3: #{tpu_custom_call.1} parent=1 // pred_check_branch
      %15 = sbr.rel (0) target = $region5
    $region4: #{tpu_custom_call.1} parent=1 // pred_region
      %s17 = ssub.s32 2048, 2048
      %18 = vsyncadd [#allocation3], %s17
      %s19 = sshll.u32 [#allocation2], 4
      %s20 = int_to_ptr.vmem [resolvable:$true] %s19
      %25 = dma.hbm_to_vmem [thread:$0]  %s0, 2048, %s20, [#allocation3], 128, 128, 8
    $region5: #{tpu_custom_call.1} parent=1 // pred_fallthru
      _
    // Predicated region
    $region6: #{tpu_custom_call.1} parent=1 // pred_check
      _
    $region7: #{tpu_custom_call.1} parent=1 // pred_check_branch
      %27 = sbr.rel (0) target = $region9
    $region8: #{tpu_custom_call.1} parent=1 // pred_region
      _
    $region9: #{tpu_custom_call.1} parent=1 // pred_fallthru
      _
    // Predicated region
    $region10: #{tpu_custom_call.1} parent=1 // pred_check
      _
    $region11: #{tpu_custom_call.1} parent=1 // pred_check_branch
      %29 = sbr.rel (0) target = $region13
    $region12: #{tpu_custom_call.1} parent=1 // pred_region
      _
    $region13: #{tpu_custom_call.1} parent=1 // pred_fallthru
      _
    // Predicated region
    $region14: #{tpu_custom_call.1} parent=1 // pred_check
      _
    $region15: #{tpu_custom_call.1} parent=1 // pred_check_branch
      %31 = sbr.rel (0) target = $region17
    $region16: #{tpu_custom_call.1} parent=1 // pred_region
      _
    $region17: #{tpu_custom_call.1} parent=1 // pred_fallthru
      _
    // Predicated region
    $region18: #{tpu_custom_call.1} parent=1 // pred_check
      _
    $region19: #{tpu_custom_call.1} parent=1 // pred_check_branch
      %33 = sbr.rel (0) target = $region21
    $region20: #{tpu_custom_call.1} parent=1 // pred_region
      _
    $region21: #{tpu_custom_call.1} parent=1 // pred_fallthru
      _
    // Predicated region
    $region22: #{tpu_custom_call.1} parent=1 // pred_check
      _
    $region23: #{tpu_custom_call.1} parent=1 // pred_check_branch
      %35 = sbr.rel (0) target = $region25
    $region24: #{tpu_custom_call.1} parent=1 // pred_region
      _
    $region25: #{tpu_custom_call.1} parent=1 // pred_fallthru
      _
    // Predicated region
    $region26: #{tpu_custom_call.1} parent=1 // pred_check
      _
    $region27: #{tpu_custom_call.1} parent=1 // pred_check_branch
      %37 = sbr.rel (0) target = $region29
    $region28: #{tpu_custom_call.1} parent=1 // pred_region
      _
    $region29: #{tpu_custom_call.1} parent=1 // pred_fallthru
      _
    // Predicated region
    $region30: #{tpu_custom_call.1} parent=1 // pred_check
      _
    $region31: #{tpu_custom_call.1} parent=1 // pred_check_branch
      %39 = sbr.rel (0) target = $region33
    $region32: #{tpu_custom_call.1} parent=1 // pred_region
      %40 = dma.done [#allocation3], 2048
    $region33: #{tpu_custom_call.1} parent=1 // pred_fallthru
      _
    %v42 = vld [vmem:[#allocation2] sm:$0xff]
    %v43 = vld [vmem:[#allocation2 + $0x8] sm:$0xff]
    %v44 = vld [vmem:[#allocation2 + $0x10] sm:$0xff]
    %v45 = vld [vmem:[#allocation2 + $0x18] sm:$0xff]
    %v46 = vld [vmem:[#allocation2 + $0x20] sm:$0xff]
    %v47 = vld [vmem:[#allocation2 + $0x28] sm:$0xff]
    %v48 = vld [vmem:[#allocation2 + $0x30] sm:$0xff]
    %v49 = vld [vmem:[#allocation2 + $0x38] sm:$0xff]
    %v50 = vld [vmem:[#allocation2 + $0x40] sm:$0xff]
    %v51 = vld [vmem:[#allocation2 + $0x48] sm:$0xff]
    %v52 = vld [vmem:[#allocation2 + $0x50] sm:$0xff]
    %v53 = vld [vmem:[#allocation2 + $0x58] sm:$0xff]
    %v54 = vld [vmem:[#allocation2 + $0x60] sm:$0xff]
    %v55 = vld [vmem:[#allocation2 + $0x68] sm:$0xff]
    %v56 = vld [vmem:[#allocation2 + $0x70] sm:$0xff]
    %v57 = vld [vmem:[#allocation2 + $0x78] sm:$0xff]
    %58 = vadd.xlane.f32.xlu0 %v42
    %v59 = vpop.xlane.xlu0 %58
    %60 = vadd.xlane.f32.xlu0 %v43
    %v61 = vpop.xlane.xlu0 %60
    %62 = vadd.xlane.f32.xlu0 %v44
    %v63 = vpop.xlane.xlu0 %62
    %64 = vadd.xlane.f32.xlu0 %v45
    %v65 = vpop.xlane.xlu0 %64
    %66 = vadd.xlane.f32.xlu0 %v46
    %v67 = vpop.xlane.xlu0 %66
    %68 = vadd.xlane.f32.xlu0 %v47
    %v69 = vpop.xlane.xlu0 %68
    %70 = vadd.xlane.f32.xlu0 %v48
    %v71 = vpop.xlane.xlu0 %70
    %72 = vadd.xlane.f32.xlu0 %v49
    %v73 = vpop.xlane.xlu0 %72
    %74 = vadd.xlane.f32.xlu0 %v50
    %v75 = vpop.xlane.xlu0 %74
    %76 = vadd.xlane.f32.xlu0 %v51
    %v77 = vpop.xlane.xlu0 %76
    %78 = vadd.xlane.f32.xlu0 %v52
    %v79 = vpop.xlane.xlu0 %78
    %80 = vadd.xlane.f32.xlu0 %v53
    %v81 = vpop.xlane.xlu0 %80
    %82 = vadd.xlane.f32.xlu0 %v54
    %v83 = vpop.xlane.xlu0 %82
    %84 = vadd.xlane.f32.xlu0 %v55
    %v85 = vpop.xlane.xlu0 %84
    %86 = vadd.xlane.f32.xlu0 %v56
    %v87 = vpop.xlane.xlu0 %86
    %88 = vadd.xlane.f32.xlu0 %v57
    %v89 = vpop.xlane.xlu0 %88
    %v90 = vrcp.pop 128.0
    %v91 = vmul.f32 %v59, %v90
    %v92 = vmul.f32 %v61, %v90
    %v93 = vmul.f32 %v63, %v90
    %v94 = vmul.f32 %v65, %v90
    %v95 = vmul.f32 %v67, %v90
    %v96 = vmul.f32 %v69, %v90
    %v97 = vmul.f32 %v71, %v90
    %v98 = vmul.f32 %v73, %v90
    %v99 = vmul.f32 %v75, %v90
    %v100 = vmul.f32 %v77, %v90
    %v101 = vmul.f32 %v79, %v90
    %v102 = vmul.f32 %v81, %v90
    %v103 = vmul.f32 %v83, %v90
    %v104 = vmul.f32 %v85, %v90
    %v105 = vmul.f32 %v87, %v90
    %v106 = vmul.f32 %v89, %v90
    %v107 = vsub.f32 %v42, %v91
    %v108 = vsub.f32 %v43, %v92
    %v109 = vsub.f32 %v44, %v93
    %v110 = vsub.f32 %v45, %v94
    %v111 = vsub.f32 %v46, %v95
    %v112 = vsub.f32 %v47, %v96
    %v113 = vsub.f32 %v48, %v97
    %v114 = vsub.f32 %v49, %v98
    %v115 = vsub.f32 %v50, %v99
    %v116 = vsub.f32 %v51, %v100
    %v117 = vsub.f32 %v52, %v101
    %v118 = vsub.f32 %v53, %v102
    %v119 = vsub.f32 %v54, %v103
    %v120 = vsub.f32 %v55, %v104
    %v121 = vsub.f32 %v56, %v105
    %v122 = vsub.f32 %v57, %v106
    %v123 = vmul.f32 %v107, %v107
    %v124 = vmul.f32 %v108, %v108
    %v125 = vmul.f32 %v109, %v109
    %v126 = vmul.f32 %v110, %v110
    %v127 = vmul.f32 %v111, %v111
    %v128 = vmul.f32 %v112, %v112
    %v129 = vmul.f32 %v113, %v113
    %v130 = vmul.f32 %v114, %v114
    %v131 = vmul.f32 %v115, %v115
    %v132 = vmul.f32 %v116, %v116
    %v133 = vmul.f32 %v117, %v117
    %v134 = vmul.f32 %v118, %v118
    %v135 = vmul.f32 %v119, %v119
    %v136 = vmul.f32 %v120, %v120
    %v137 = vmul.f32 %v121, %v121
    %v138 = vmul.f32 %v122, %v122
    %139 = vadd.xlane.f32.xlu0 %v123
    %v140 = vpop.xlane.xlu0 %139
    %141 = vadd.xlane.f32.xlu0 %v124
    %v142 = vpop.xlane.xlu0 %141
    %143 = vadd.xlane.f32.xlu0 %v125
    %v144 = vpop.xlane.xlu0 %143
    %145 = vadd.xlane.f32.xlu0 %v126
    %v146 = vpop.xlane.xlu0 %145
    %147 = vadd.xlane.f32.xlu0 %v127
    %v148 = vpop.xlane.xlu0 %147
    %149 = vadd.xlane.f32.xlu0 %v128
    %v150 = vpop.xlane.xlu0 %149
    %151 = vadd.xlane.f32.xlu0 %v129
    %v152 = vpop.xlane.xlu0 %151
    %153 = vadd.xlane.f32.xlu0 %v130
    %v154 = vpop.xlane.xlu0 %153
    %155 = vadd.xlane.f32.xlu0 %v131
    %v156 = vpop.xlane.xlu0 %155
    %157 = vadd.xlane.f32.xlu0 %v132
    %v158 = vpop.xlane.xlu0 %157
    %159 = vadd.xlane.f32.xlu0 %v133
    %v160 = vpop.xlane.xlu0 %159
    %161 = vadd.xlane.f32.xlu0 %v134
    %v162 = vpop.xlane.xlu0 %161
    %163 = vadd.xlane.f32.xlu0 %v135
    %v164 = vpop.xlane.xlu0 %163
    %165 = vadd.xlane.f32.xlu0 %v136
    %v166 = vpop.xlane.xlu0 %165
    %167 = vadd.xlane.f32.xlu0 %v137
    %v168 = vpop.xlane.xlu0 %167
    %169 = vadd.xlane.f32.xlu0 %v138
    %v170 = vpop.xlane.xlu0 %169
    %v171 = vmul.f32 %v140, %v90
    %v172 = vmul.f32 %v142, %v90
    %v173 = vmul.f32 %v144, %v90
    %v174 = vmul.f32 %v146, %v90
    %v175 = vmul.f32 %v148, %v90
    %v176 = vmul.f32 %v150, %v90
    %v177 = vmul.f32 %v152, %v90
    %v178 = vmul.f32 %v154, %v90
    %v179 = vmul.f32 %v156, %v90
    %v180 = vmul.f32 %v158, %v90
    %v181 = vmul.f32 %v160, %v90
    %v182 = vmul.f32 %v162, %v90
    %v183 = vmul.f32 %v164, %v90
    %v184 = vmul.f32 %v166, %v90
    %v185 = vmul.f32 %v168, %v90
    %v186 = vmul.f32 %v170, %v90
    %v187 = vadd.f32 %v171, 1e-05
    %v188 = vadd.f32 %v172, 1e-05
    %v189 = vadd.f32 %v173, 1e-05
    %v190 = vadd.f32 %v174, 1e-05
    %v191 = vadd.f32 %v175, 1e-05
    %v192 = vadd.f32 %v176, 1e-05
    %v193 = vadd.f32 %v177, 1e-05
    %v194 = vadd.f32 %v178, 1e-05
    %v195 = vadd.f32 %v179, 1e-05
    %v196 = vadd.f32 %v180, 1e-05
    %v197 = vadd.f32 %v181, 1e-05
    %v198 = vadd.f32 %v182, 1e-05
    %v199 = vadd.f32 %v183, 1e-05
    %v200 = vadd.f32 %v184, 1e-05
    %v201 = vadd.f32 %v185, 1e-05
    %v202 = vadd.f32 %v186, 1e-05
    %v203 = vrsqrt.pop %v187
    %v204 = vrsqrt.pop %v188
    %v205 = vrsqrt.pop %v189
    %v206 = vrsqrt.pop %v190
    %v207 = vrsqrt.pop %v191
    %v208 = vrsqrt.pop %v192
    %v209 = vrsqrt.pop %v193
    %v210 = vrsqrt.pop %v194
    %v211 = vrsqrt.pop %v195
    %v212 = vrsqrt.pop %v196
    %v213 = vrsqrt.pop %v197
    %v214 = vrsqrt.pop %v198
    %v215 = vrsqrt.pop %v199
    %v216 = vrsqrt.pop %v200
    %v217 = vrsqrt.pop %v201
    %v218 = vrsqrt.pop %v202
    %v219 = vmul.f32 %v107, %v203
    %v220 = vmul.f32 %v108, %v204
    %v221 = vmul.f32 %v109, %v205
    %v222 = vmul.f32 %v110, %v206
    %v223 = vmul.f32 %v111, %v207
    %v224 = vmul.f32 %v112, %v208
    %v225 = vmul.f32 %v113, %v209
    %v226 = vmul.f32 %v114, %v210
    %v227 = vmul.f32 %v115, %v211
    %v228 = vmul.f32 %v116, %v212
    %v229 = vmul.f32 %v117, %v213
    %v230 = vmul.f32 %v118, %v214
    %v231 = vmul.f32 %v119, %v215
    %v232 = vmul.f32 %v120, %v216
    %v233 = vmul.f32 %v121, %v217
    %v234 = vmul.f32 %v122, %v218
    %v235 = vld [vmem:[%s1] sm:$0x1]
    %v237 = vlaneseq
    %v238 = vshrl.u32 %v237, 7
    %v239 = vsub.s32 0, %v238
    %v240 = vrot.slane %v235, %v239
    %v242 = vmul.f32 %v219, %v240
    %v243 = vmul.f32 %v220, %v240
    %v244 = vmul.f32 %v221, %v240
    %v245 = vmul.f32 %v222, %v240
    %v246 = vmul.f32 %v223, %v240
    %v247 = vmul.f32 %v224, %v240
    %v248 = vmul.f32 %v225, %v240
    %v249 = vmul.f32 %v226, %v240
    %v250 = vmul.f32 %v227, %v240
    %v251 = vmul.f32 %v228, %v240
    %v252 = vmul.f32 %v229, %v240
    %v253 = vmul.f32 %v230, %v240
    %v254 = vmul.f32 %v231, %v240
    %v255 = vmul.f32 %v232, %v240
    %v256 = vmul.f32 %v233, %v240
    %v257 = vmul.f32 %v234, %v240
    %v258 = vld [vmem:[%s2] sm:$0x1]
    %v260 = vlaneseq
    %v261 = vshrl.u32 %v260, 7
    %v262 = vsub.s32 0, %v261
    %v263 = vrot.slane %v258, %v262
    %v265 = vadd.f32 %v242, %v263
    %v266 = vadd.f32 %v243, %v263
    %v267 = vadd.f32 %v244, %v263
    %v268 = vadd.f32 %v245, %v263
    %v269 = vadd.f32 %v246, %v263
    %v270 = vadd.f32 %v247, %v263
    %v271 = vadd.f32 %v248, %v263
    %v272 = vadd.f32 %v249, %v263
    %v273 = vadd.f32 %v250, %v263
    %v274 = vadd.f32 %v251, %v263
    %v275 = vadd.f32 %v252, %v263
    %v276 = vadd.f32 %v253, %v263
    %v277 = vadd.f32 %v254, %v263
    %v278 = vadd.f32 %v255, %v263
    %v279 = vadd.f32 %v256, %v263
    %v280 = vadd.f32 %v257, %v263
    %v281 = vpack.c.bf16 %v266, %v265
    %v282 = vpack.c.bf16 %v268, %v267
    %v283 = vpack.c.bf16 %v270, %v269
    %v284 = vpack.c.bf16 %v272, %v271
    %v285 = vpack.c.bf16 %v274, %v273
    %v286 = vpack.c.bf16 %v276, %v275
    %v287 = vpack.c.bf16 %v278, %v277
    %v288 = vpack.c.bf16 %v280, %v279
    %v289 = vld [vmem:[%s3] sm:$0xf]
    %v290 = vld [vmem:[%s3 + $0x4] sm:$0xf]
    %v291 = vld [vmem:[%s3 + $0x8] sm:$0xf]
    %v292 = vld [vmem:[%s3 + $0xc] sm:$0xf]
    %v293 = vlaneseq
    %v294 = vshrl.u32 %v293, 7
    %v295 = vlaneseq
    %v296 = vand.u32 %v295, 127
    %v297 = vmul.u32 %v294, 64
    %vm298 = vcmp.ge.s32.totalorder %v296, %v297
    %v299 = vadd.s32 %v294, 1
    %v300 = vmul.u32 %v299, 64
    %vm301 = vcmp.lt.s32.totalorder %v296, %v300
    %vm302 = vmand %vm298, %vm301
    %v303 = vsel %vm302, 0.015625, 0.0
    %v304 = vpack.c.bf16 %v303, %v303
    %305 = vmatprep.subr.bf16.mxu0 0
    %306 = vmatpush1.bf16.msra.mxu0 %v281
    %307 = vmatprep.subr.bf16.mxu0 0
    %308 = vmatpush1.bf16.msra.mxu0 %v282
    %309 = vmatprep.subr.bf16.mxu0 0
    %310 = vmatpush1.bf16.msra.mxu0 %v283
    %311 = vmatprep.subr.bf16.mxu0 0
    %312 = vmatpush1.bf16.msra.mxu0 %v284
    %313 = vmatprep.subr.bf16.mxu0 0
    %314 = vmatpush1.bf16.msra.mxu0 %v285
    %315 = vmatprep.subr.bf16.mxu0 0
    %316 = vmatpush1.bf16.msra.mxu0 %v286
    %317 = vmatprep.subr.bf16.mxu0 0
    %318 = vmatpush1.bf16.msra.mxu0 %v287
    %319 = vmatprep.subr.bf16.mxu0 0
    %320 = vmatpush1.bf16.msra.mxu0 %v288
    %321 = vmatprep.subr.bf16.mxu0 0
    %322 = vmatpush1.bf16.msra.mxu0 0
    %323 = vmatprep.subr.bf16.mxu0 0
    %324 = vmatpush1.bf16.msra.mxu0 0
    %325 = vmatprep.subr.bf16.mxu0 0
    %326 = vmatpush1.bf16.msra.mxu0 0
    %327 = vmatprep.subr.bf16.mxu0 0
    %328 = vmatpush1.bf16.msra.mxu0 0
    %329 = vmatprep.subr.bf16.mxu0 0
    %330 = vmatpush1.bf16.msra.mxu0 0
    %331 = vmatprep.subr.bf16.mxu0 0
    %332 = vmatpush1.bf16.msra.mxu0 0
    %333 = vmatprep.subr.bf16.mxu0 0
    %334 = vmatpush1.bf16.msra.mxu0 0
    %335 = vmatprep.subr.bf16.mxu0 0
    %336 = vmatpush1.bf16.msra.mxu0 0
    %337 = vmatprep.mubr.bf16.mxu0 0
    %338 = vmatmul.mubr.bf16.gmra.mrb[0].mxu0 %v304
    %v339 = vpop.f32.mrb[0].mxu0
    %v340 = vadd.f32 0.0, %v339
    %v341 = vpop.f32.mrb[0].mxu0
    %v342 = vpop.f32.mrb[0].mxu0
    %v343 = vpop.f32.mrb[0].mxu0
    %344 = vdwg.mxu0
    %v345 = vld [vmem:[%s4] sm:$0xf]
    %v346 = vld [vmem:[%s4 + $0x4] sm:$0xf]
    %v347 = vld [vmem:[%s4 + $0x8] sm:$0xf]
    %v348 = vld [vmem:[%s4 + $0xc] sm:$0xf]
    %v349 = vpack.c.bf16 %v340, %v340
    %v350 = vld [vmem:[%s5] sm:$0xff]
    %v351 = vld [vmem:[%s5 + $0x8] sm:$0xff]
    %v352 = vld [vmem:[%s5 + $0x10] sm:$0xff]
    %v353 = vld [vmem:[%s5 + $0x18] sm:$0xff]
    %355 = vset.pattern.permute.xlu0 0
    %356 = vperm.xlu0 %355, %v350
    %v357 = vpop.permute.xlu0 %356
    %360 = vset.pattern.permute.xlu0 0
    %361 = vperm.xlu0 %360, %v351
    %v362 = vpop.permute.xlu0 %361
    %365 = vset.pattern.permute.xlu0 0
    %366 = vperm.xlu0 %365, %v352
    %v367 = vpop.permute.xlu0 %366
    %370 = vset.pattern.permute.xlu0 0
    %371 = vperm.xlu0 %370, %v353
    %v372 = vpop.permute.xlu0 %371
    %v378 = vunpack.c.l.b16 %v345
    %v379 = vunpack.c.l.b16 %v346
    %v380 = vunpack.c.l.b16 %v347
    %v381 = vunpack.c.l.b16 %v348
    %v382 = vpack.c.b16 %v379, %v378
    %v383 = vpack.c.b16 %v381, %v380
    %386 = vmatprep.subr.bf16.mxu0 0
    %387 = vmatpush1.bf16.xpose.msra.mxu0 %v349
    %388 = vmatprep.subr.bf16.mxu0 0
    %389 = vmatpush1.bf16.xpose.msra.mxu0 0
    %390 = vmatprep.subr.bf16.mxu0 0
    %391 = vmatpush1.bf16.xpose.msra.mxu0 0
    %392 = vmatprep.subr.bf16.mxu0 0
    %393 = vmatpush1.bf16.xpose.msra.mxu0 0
    %394 = vmatprep.subr.bf16.mxu0 0
    %395 = vmatpush1.bf16.xpose.msra.mxu0 0
    %396 = vmatprep.subr.bf16.mxu0 0
    %397 = vmatpush1.bf16.xpose.msra.mxu0 0
    %398 = vmatprep.subr.bf16.mxu0 0
    %399 = vmatpush1.bf16.xpose.msra.mxu0 0
    %400 = vmatprep.subr.bf16.mxu0 0
    %401 = vmatpush1.bf16.xpose.msra.mxu0 0
    %402 = vmatprep.subr.bf16.mxu0 0
    %403 = vmatpush1.bf16.xpose.msra.mxu0 0
    %404 = vmatprep.subr.bf16.mxu0 0
    %405 = vmatpush1.bf16.xpose.msra.mxu0 0
    %406 = vmatprep.subr.bf16.mxu0 0
    %407 = vmatpush1.bf16.xpose.msra.mxu0 0
    %408 = vmatprep.subr.bf16.mxu0 0
    %409 = vmatpush1.bf16.xpose.msra.mxu0 0
    %410 = vmatprep.subr.bf16.mxu0 0
    %411 = vmatpush1.bf16.xpose.msra.mxu0 0
    %412 = vmatprep.subr.bf16.mxu0 0
    %413 = vmatpush1.bf16.xpose.msra.mxu0 0
    %414 = vmatprep.subr.bf16.mxu0 0
    %415 = vmatpush1.bf16.xpose.msra.mxu0 0
    %416 = vmatprep.subr.bf16.mxu0 0
    %417 = vmatpush1.bf16.xpose.msra.mxu0 0
    %418 = vmatprep.mubr.bf16.mxu0 0
    %419 = vmatmul.mubr.bf16.gmra.mrb[0].mxu0 %v382
    %v420 = vpop.f32.mrb[0].mxu0
    %v421 = vadd.f32 %v357, %v420
    %v422 = vpop.f32.mrb[0].mxu0
    %v423 = vpop.f32.mrb[0].mxu0
    %v424 = vadd.f32 %v362, %v423
    %v425 = vpop.f32.mrb[0].mxu0
    %426 = vmatprep.mubr.bf16.mxu0 0
    %427 = vmatmul.mubr.bf16.gmra.mrb[0].mxu0 %v383
    %v428 = vpop.f32.mrb[0].mxu0
    %v429 = vadd.f32 %v367, %v428
    %v430 = vpop.f32.mrb[0].mxu0
    %v431 = vpop.f32.mrb[0].mxu0
    %v432 = vadd.f32 %v372, %v431
    %v433 = vpop.f32.mrb[0].mxu0
    %434 = vdwg.mxu0
    %v435 = vsel %vm302, 1.0, 0.0
    %v436 = vpack.c.bf16 %v435, %v435
    %v437 = vpack.c.bf16 %v424, %v421
    %v438 = vpack.c.bf16 %v432, %v429
    %vm439 = vcmask 64512
    %v441 = vsel %vm439, %v437, 0
    %v444 = vsel %vm439, %v438, 0
    %vm446 = vcmask 1043456
    %v448 = vsel %vm446, %v436, 0
    %450 = vmatprep.subr.bf16.mxu0 0
    %451 = vmatpush1.bf16.msra.mxu0 %v448
    %452 = vmatprep.subr.bf16.mxu0 0
    %453 = vmatpush1.bf16.msra.mxu0 0
    %454 = vmatprep.subr.bf16.mxu0 0
    %455 = vmatpush1.bf16.msra.mxu0 0
    %456 = vmatprep.subr.bf16.mxu0 0
    %457 = vmatpush1.bf16.msra.mxu0 0
    %458 = vmatprep.subr.bf16.mxu0 0
    %459 = vmatpush1.bf16.msra.mxu0 0
    %460 = vmatprep.subr.bf16.mxu0 0
    %461 = vmatpush1.bf16.msra.mxu0 0
    %462 = vmatprep.subr.bf16.mxu0 0
    %463 = vmatpush1.bf16.msra.mxu0 0
    %464 = vmatprep.subr.bf16.mxu0 0
    %465 = vmatpush1.bf16.msra.mxu0 0
    %466 = vmatprep.subr.bf16.mxu0 0
    %467 = vmatpush1.bf16.msra.mxu0 0
    %468 = vmatprep.subr.bf16.mxu0 0
    %469 = vmatpush1.bf16.msra.mxu0 0
    %470 = vmatprep.subr.bf16.mxu0 0
    %471 = vmatpush1.bf16.msra.mxu0 0
    %472 = vmatprep.subr.bf16.mxu0 0
    %473 = vmatpush1.bf16.msra.mxu0 0
    %474 = vmatprep.subr.bf16.mxu0 0
    %475 = vmatpush1.bf16.msra.mxu0 0
    %476 = vmatprep.subr.bf16.mxu0 0
    %477 = vmatpush1.bf16.msra.mxu0 0
    %478 = vmatprep.subr.bf16.mxu0 0
    %479 = vmatpush1.bf16.msra.mxu0 0
    %480 = vmatprep.subr.bf16.mxu0 0
    %481 = vmatpush1.bf16.msra.mxu0 0
    %482 = vmatprep.mubr.bf16.mxu0 0
    %483 = vmatmul.mubr.bf16.gmra.mrb[0].mxu0 %v441
    %v484 = vpop.f32.mrb[0].mxu0
    %v485 = vadd.f32 0.0, %v484
    %v486 = vpop.f32.mrb[0].mxu0
    %v487 = vpop.f32.mrb[0].mxu0
    %v488 = vadd.f32 0.0, %v487
    %v489 = vpop.f32.mrb[0].mxu0
    %490 = vmatprep.mubr.bf16.mxu0 0
    %491 = vmatmul.mubr.bf16.gmra.mrb[0].mxu0 %v444
    %v492 = vpop.f32.mrb[0].mxu0
    %v493 = vadd.f32 0.0, %v492
    %v494 = vpop.f32.mrb[0].mxu0
    %v495 = vpop.f32.mrb[0].mxu0
    %v496 = vadd.f32 0.0, %v495
    %v497 = vpop.f32.mrb[0].mxu0
    %498 = vdwg.mxu0
    %v503 = vunpack.c.l.b16 %v289
    %v504 = vunpack.c.l.b16 %v290
    %v505 = vunpack.c.l.b16 %v291
    %v506 = vunpack.c.l.b16 %v292
    %v507 = vpack.c.b16 %v504, %v503
    %v508 = vpack.c.b16 %v506, %v505
    %511 = vmatprep.subr.bf16.mxu0 0
    %512 = vmatpush1.bf16.xpose.msra.mxu0 %v281
    %513 = vmatprep.subr.bf16.mxu0 0
    %514 = vmatpush1.bf16.xpose.msra.mxu0 %v282
    %515 = vmatprep.subr.bf16.mxu0 0
    %516 = vmatpush1.bf16.xpose.msra.mxu0 %v283
    %517 = vmatprep.subr.bf16.mxu0 0
    %518 = vmatpush1.bf16.xpose.msra.mxu0 %v284
    %519 = vmatprep.subr.bf16.mxu0 0
    %520 = vmatpush1.bf16.xpose.msra.mxu0 %v285
    %521 = vmatprep.subr.bf16.mxu0 0
    %522 = vmatpush1.bf16.xpose.msra.mxu0 %v286
    %523 = vmatprep.subr.bf16.mxu0 0
    %524 = vmatpush1.bf16.xpose.msra.mxu0 %v287
    %525 = vmatprep.subr.bf16.mxu0 0
    %526 = vmatpush1.bf16.xpose.msra.mxu0 %v288
    %527 = vmatprep.subr.bf16.mxu0 0
    %528 = vmatpush1.bf16.xpose.msra.mxu0 0
    %529 = vmatprep.subr.bf16.mxu0 0
    %530 = vmatpush1.bf16.xpose.msra.mxu0 0
    %531 = vmatprep.subr.bf16.mxu0 0
    %532 = vmatpush1.bf16.xpose.msra.mxu0 0
    %533 = vmatprep.subr.bf16.mxu0 0
    %534 = vmatpush1.bf16.xpose.msra.mxu0 0
    %535 = vmatprep.subr.bf16.mxu0 0
    %536 = vmatpush1.bf16.xpose.msra.mxu0 0
    %537 = vmatprep.subr.bf16.mxu0 0
    %538 = vmatpush1.bf16.xpose.msra.mxu0 0
    %539 = vmatprep.subr.bf16.mxu0 0
    %540 = vmatpush1.bf16.xpose.msra.mxu0 0
    %541 = vmatprep.subr.bf16.mxu0 0
    %542 = vmatpush1.bf16.xpose.msra.mxu0 0
    %543 = vmatprep.mubr.bf16.mxu0 0
    %544 = vmatmul.mubr.bf16.gmra.mrb[0].mxu0 %v507
    %v545 = vpop.f32.mrb[0].mxu0
    %v546 = vadd.f32 %v485, %v545
    %v547 = vpop.f32.mrb[0].mxu0
    %v548 = vpop.f32.mrb[0].mxu0
    %v549 = vadd.f32 %v488, %v548
    %v550 = vpop.f32.mrb[0].mxu0
    %551 = vmatprep.mubr.bf16.mxu0 0
    %552 = vmatmul.mubr.bf16.gmra.mrb[0].mxu0 %v508
    %v553 = vpop.f32.mrb[0].mxu0
    %v554 = vadd.f32 %v493, %v553
    %v555 = vpop.f32.mrb[0].mxu0
    %v556 = vpop.f32.mrb[0].mxu0
    %v557 = vadd.f32 %v496, %v556
    %v558 = vpop.f32.mrb[0].mxu0
    %559 = vdwg.mxu0
    %v560 = vmul.f32 %v546, %v546
    %v561 = vmul.f32 %v549, %v549
    %v562 = vmul.f32 %v554, %v554
    %v563 = vmul.f32 %v557, %v557
    %v564 = vmul.f32 %v546, %v560
    %v565 = vmul.f32 %v549, %v561
    %v566 = vmul.f32 %v554, %v562
    %v567 = vmul.f32 %v557, %v563
    %v568 = vmul.f32 %v564, 0.044715
    %v569 = vmul.f32 %v565, 0.044715
    %v570 = vmul.f32 %v566, 0.044715
    %v571 = vmul.f32 %v567, 0.044715
    %v572 = vadd.f32 %v546, %v568
    %v573 = vadd.f32 %v549, %v569
    %v574 = vadd.f32 %v554, %v570
    %v575 = vadd.f32 %v557, %v571
    %v576 = vmul.f32 %v572, 0.7978846
    %v577 = vmul.f32 %v573, 0.7978846
    %v578 = vmul.f32 %v574, 0.7978846
    %v579 = vmul.f32 %v575, 0.7978846
    %v580 = vtanh.pop %v576
    %v581 = vtanh.pop %v577
    %v582 = vtanh.pop %v578
    %v583 = vtanh.pop %v579
    %v584 = vadd.f32 %v580, 1.0
    %v585 = vadd.f32 %v581, 1.0
    %v586 = vadd.f32 %v582, 1.0
    %v587 = vadd.f32 %v583, 1.0
    %v588 = vmul.f32 %v584, 0.5
    %v589 = vmul.f32 %v585, 0.5
    %v590 = vmul.f32 %v586, 0.5
    %v591 = vmul.f32 %v587, 0.5
    %v592 = vmul.f32 %v546, %v588
    %v593 = vmul.f32 %v549, %v589
    %v594 = vmul.f32 %v554, %v590
    %v595 = vmul.f32 %v557, %v591
    %v596 = vld [vmem:[%s6] sm:$0xff]
    %v597 = vld [vmem:[%s6 + $0x8] sm:$0xff]
    %v598 = vld [vmem:[%s6 + $0x10] sm:$0xff]
    %v599 = vld [vmem:[%s6 + $0x18] sm:$0xff]
    %601 = vset.pattern.permute.xlu0 0
    %602 = vperm.xlu0 %601, %v596
    %v603 = vpop.permute.xlu0 %602
    %606 = vset.pattern.permute.xlu0 0
    %607 = vperm.xlu0 %606, %v597
    %v608 = vpop.permute.xlu0 %607
    %611 = vset.pattern.permute.xlu0 0
    %612 = vperm.xlu0 %611, %v598
    %v613 = vpop.permute.xlu0 %612
    %616 = vset.pattern.permute.xlu0 0
    %617 = vperm.xlu0 %616, %v599
    %v618 = vpop.permute.xlu0 %617
    %v620 = vmul.f32 %v592, %v603
    %v621 = vmul.f32 %v593, %v608
    %v622 = vmul.f32 %v594, %v613
    %v623 = vmul.f32 %v595, %v618
    %v624 = vadd.f32 %v620, %v621
    %v625 = vadd.f32 %v624, %v622
    %v626 = vadd.f32 %v625, %v623
    %v627 = vrot.slane %v626, 4
    %v628 = vadd.f32 %v626, %v627
    %v629 = vrot.slane %v628, 2
    %v630 = vadd.f32 %v628, %v629
    %v631 = vrot.slane %v630, 1
    %v632 = vadd.f32 %v630, %v631
    %633 = vst [vmem:[#allocation5] sm:$0x1] %v632
    // Predicated region
    $region34: #{tpu_custom_call.1} parent=1 // pred_check
      _
    $region35: #{tpu_custom_call.1} parent=1 // pred_check_branch
      %635 = sbr.rel (0) target = $region37
    $region36: #{tpu_custom_call.1} parent=1 // pred_region
      %s637 = ssub.s32 16, 16
      %638 = vsyncadd [#allocation4], %s637
      %s640 = sshll.u32 [#allocation5], 4
      %s641 = int_to_ptr.vmem [resolvable:$true] %s640
      %643 = dma.vmem_to_hbm [thread:$0]  %s641, 16, %s7, [#allocation4]
    $region37: #{tpu_custom_call.1} parent=1 // pred_fallthru
      _
    // Predicated region
    $region38: #{tpu_custom_call.1} parent=1 // pred_check
      _
    $region39: #{tpu_custom_call.1} parent=1 // pred_check_branch
      %645 = sbr.rel (0) target = $region41
    $region40: #{tpu_custom_call.1} parent=1 // pred_region
      %646 = dma.done [#allocation4], 16
    $region41: #{tpu_custom_call.1} parent=1 // pred_fallthru
      _
    %647 = vsyncpa [#allocation3], 1
    %648 = vsyncpa [#allocation4], 1

</llo_original>
